<compile_context>
chip_gen: v5e
topology: v5e:2x2
jax: 0.10.0
libtpu: 0.0.40
codegen_flags: <defaults>
</compile_context>

<pallas_src>
import functools
import math

import numpy as np
import jax
import jax.numpy as jnp
from jax.experimental import pallas as pl
from jax.experimental.pallas import tpu as pltpu

LANE = 128                      # all channel dims are padded to multiples of this
TM_MAX = 256                    # output row tile (<=512 fits v7x's 64 MiB VMEM)
TN = 128                        # output col tile (128 also suits v5e's 4x128 MXU)
VMEM_LIMIT = 48 * 1024 * 1024   # explicit scoped-VMEM budget (under every chip)


def _round_up(a, m):
    return (a + m - 1) // m * m


def _pad_axis(a, axis, size):
    if a.shape[axis] == size:
        return a
    pads = [(0, 0)] * a.ndim
    pads[axis] = (0, size - a.shape[axis])
    return jnp.pad(a, pads)


# ---------------------------------------------------------------------------
# Kernel 1: shifted multi-tap GEMM  (all convs + all Linear layers)
# ---------------------------------------------------------------------------
def _shifted_mt_gemm_kernel(shift_ref, x_ref, w_ref, b_ref, o_ref, *, tm, scale):
    """out[g, m, n] tile = scale * sum_t X[g, m*tm+shift[t] : +tm, :] @ W[t,:,n] + b.

    Grid = (G, M_tiles, N_tiles, taps); taps is the innermost ('arbitrary')
    reduction axis, so the output tile is resident across it and is used as the
    accumulator (no VMEM scratch).  Bias + scaling happen once, in a
    pl.when(last-tap) epilogue; HBM writeback happens once per tile.
    """
    t = pl.program_id(3)

    @pl.when(t == 0)
    def _init():
        o_ref[...] = jnp.zeros_like(o_ref)

    start = pl.program_id(1) * tm + shift_ref[t]
    # Activation slab stays f32 in VMEM; the MXU still gets bf16 operands.
    xs = x_ref[pl.ds(start, tm), :].astype(jnp.bfloat16)
    o_ref[...] += jnp.dot(xs, w_ref[...], preferred_element_type=jnp.float32)

    @pl.when(t == pl.num_programs(3) - 1)
    def _epilogue():
        o_ref[...] = o_ref[...] * scale + b_ref[...]


def shifted_mt_gemm(X, W, b, shifts, *, out_rows, scale=1.0):
    """X: (G, Mx, K) f32, W: (taps, K, N), b: (N,) or None, shifts: list[int].

    Returns (G, out_rows, N) f32 with
        out[g, r, :] = scale * sum_t X[g, r + shifts[t], :] @ W[t] + b.
    K and N are zero-padded to lane-dense multiples of 128; output rows are
    padded to the row tile and cropped on return.
    """
    G, Mx, K = X.shape
    taps, Kw, N = W.shape
    assert Kw == K and taps == len(shifts)

    Kp = _round_up(max(K, LANE), LANE)
    Np = _round_up(max(N, LANE), LANE)
    tn = TN
    tm = min(TM_MAX, _round_up(out_rows, 8))
    m_pad = _round_up(out_rows, tm)
    max_shift = int(max(shifts))
    mx_req = max(Mx, m_pad + max_shift)          # enough rows for every shifted read

    Xp = _pad_axis(_pad_axis(X.astype(jnp.float32), 2, Kp), 1, mx_req)
    Wp = _pad_axis(_pad_axis(W.astype(jnp.float32), 1, Kp), 2, Np).astype(jnp.bfloat16)
    if b is None:
        b = jnp.zeros((N,), jnp.float32)
    bp = _pad_axis(b.astype(jnp.float32).reshape(1, N), 1, Np)
    shift_arr = jnp.asarray(np.asarray(shifts, dtype=np.int32))

    grid = (G, m_pad // tm, Np // tn, taps)
    kernel = functools.partial(_shifted_mt_gemm_kernel, tm=tm, scale=float(scale))
    out = pl.pallas_call(
        kernel,
        grid_spec=pltpu.PrefetchScalarGridSpec(
            num_scalar_prefetch=1,          # per-tap row-shift table lives in SMEM
            grid=grid,
            in_specs=[
                # One zero-padded (rows, K) slab per group stays VMEM-resident
                # (block index only changes with g); taps are read as shifted
                # row windows -> no ks^2 im2col copies in HBM.
                pl.BlockSpec((None, mx_req, Kp), lambda g, m, n, t, s: (g, 0, 0)),
                pl.BlockSpec((None, Kp, tn), lambda g, m, n, t, s: (t, 0, n)),
                pl.BlockSpec((1, tn), lambda g, m, n, t, s: (0, n)),
            ],
            out_specs=pl.BlockSpec((None, tm, tn), lambda g, m, n, t, s: (g, m, n)),
        ),
        out_shape=jax.ShapeDtypeStruct((G, m_pad, Np), jnp.float32),
        compiler_params=pltpu.CompilerParams(
            dimension_semantics=("parallel", "parallel", "parallel", "arbitrary"),
            vmem_limit_bytes=VMEM_LIMIT,
        ),
    )(shift_arr, Xp, Wp, bp)
    return out[:, :out_rows, :N]


# ---------------------------------------------------------------------------
# Kernel 2: fused (softmax-weighted combine + residual + shared LayerNorm)
# ---------------------------------------------------------------------------
def _combine_ln_kernel(res_ref, x_ref, pw_ref, g_ref, b_ref, o_ref, *, k, d_true):
    acc = x_ref[...].astype(jnp.float32)
    for i in range(k):
        acc = acc + res_ref[i].astype(jnp.float32) * pw_ref[0:1, i:i + 1]
    dp = acc.shape[-1]
    lane = jax.lax.broadcasted_iota(jnp.int32, (1, dp), 1)
    maskf = (lane < d_true).astype(jnp.float32)   # LN statistics over true lanes only
    inv_d = 1.0 / float(d_true)
    mean = jnp.sum(acc * maskf, axis=-1, keepdims=True) * inv_d
    diff = (acc - mean) * maskf
    var = jnp.sum(diff * diff, axis=-1, keepdims=True) * inv_d
    inv = jax.lax.rsqrt(var + 1e-5)
    o_ref[...] = diff * inv * g_ref[...] + b_ref[...]


def combine_layernorm(res_stack, x, pw, gamma, beta, d_true):
    """res_stack: (k, B, T, Dp), x: (B, T, Dp), pw: (B, 1, k) softmax weights,
    gamma/beta: (1, Dp).  Returns LayerNorm(sum_i pw_i * res_i + x)."""
    k, B, T, Dp = res_stack.shape
    kernel = functools.partial(_combine_ln_kernel, k=k, d_true=d_true)
    return pl.pallas_call(
        kernel,
        grid=(B,),
        in_specs=[
            pl.BlockSpec((k, None, T, Dp), lambda b: (0, b, 0, 0)),
            pl.BlockSpec((None, T, Dp), lambda b: (b, 0, 0)),
            pl.BlockSpec((None, 1, k), lambda b: (b, 0, 0)),
            pl.BlockSpec((1, Dp), lambda b: (0, 0)),
            pl.BlockSpec((1, Dp), lambda b: (0, 0)),
        ],
        out_specs=pl.BlockSpec((None, T, Dp), lambda b: (b, 0, 0)),
        out_shape=jax.ShapeDtypeStruct((B, T, Dp), jnp.float32),
        compiler_params=pltpu.CompilerParams(
            dimension_semantics=("parallel",),
            vmem_limit_bytes=VMEM_LIMIT,
        ),
    )(res_stack.astype(jnp.float32), x.astype(jnp.float32),
      pw.astype(jnp.float32), gamma, beta)


# ---------------------------------------------------------------------------
# Model pieces (thin JAX glue around the two kernels)
# ---------------------------------------------------------------------------
def inception_forward(x_nhwc, conv):
    """Fused Inception_Block_V1: all kernel sizes' taps accumulate inside ONE
    pallas_call; mean(1/num_kernels) + folded biases are applied in the kernel
    epilogue.  Spatial taps are row shifts of a single flattened zero-padded
    copy of the activation (no im2col)."""
    B, H, W, Cp = x_nhwc.shape
    kss = conv["kernel_sizes"]
    P = max((ks - 1) // 2 for ks in kss)
    Wp = W + 2 * P
    xpad = jnp.pad(x_nhwc, ((0, 0), (P, P), (P, P), (0, 0)))
    x_flat = xpad.reshape(B, (H + 2 * P) * Wp, Cp)
    shifts = []
    for ks in kss:
        p = (ks - 1) // 2
        for di in range(ks):
            for dj in range(ks):
                shifts.append((P - p + di) * Wp + (P - p + dj))
    y = shifted_mt_gemm(x_flat, conv["w"], conv["b"], shifts,
                        out_rows=H * Wp, scale=1.0 / len(kss))
    # columns [W, Wp) are spill-over from the flattened layout: crop them.
    return y.reshape(B, H, Wp, -1)[:, :, :W, :]


def fft_for_period(x, k):
    # TODO(synk): host pull of top-k indices (data -> static reshape shapes),
    # mirroring the reference's .detach().cpu().numpy().
    xf = jnp.fft.rfft(x, axis=1)
    amp = jnp.abs(xf)
    freq = amp.mean(axis=0).mean(axis=-1)
    freq = freq.at[0].set(0.0)
    _, top = jax.lax.top_k(freq, k)
    top_np = np.maximum(np.asarray(jax.device_get(top)), 1)   # guard degenerate f=0
    periods = (x.shape[1] // top_np).astype(np.int64)
    period_weight = amp.mean(axis=-1)[:, top]                  # (B, k)
    return periods, period_weight


def times_block(x, blk, cfg, ln_g, ln_b):
    B, T, Dp = x.shape
    D = cfg["d_model"]
    k_top = cfg["top_k"]
    periods, period_weight = fft_for_period(x[..., :D], k_top)

    res = []
    for i in range(k_top):
        p = int(periods[i])
        length = T if T % p == 0 else (T // p + 1) * p
        xt = x if length == T else jnp.concatenate(
            [x, jnp.zeros((B, length - T, Dp), x.dtype)], axis=1)
        xh = xt.reshape(B, length // p, p, Dp)          # channels-last (NHWC)
        y = inception_forward(xh, blk["conv1"])         # (B, H, p, Fp)
        # TODO(synk): exact-erf GELU kept at jnp level (nn.GELU() numerics).
        y = jax.nn.gelu(y, approximate=False)
        z = inception_forward(y, blk["conv2"])          # (B, H, p, Dp)
        z = z.reshape(B, length, Dp)[:, :T, :]
        res.append(z)

    res_stack = jnp.stack(res, axis=0)                  # (k, B, T, Dp)
    pw = jax.nn.softmax(period_weight, axis=1).reshape(B, 1, k_top)
    return combine_layernorm(res_stack, x, pw, ln_g, ln_b, D)


def timesnet_forward(params, cfg, x_enc, x_mark_enc, x_dec=None, x_mark_dec=None):
    B, L, _ = x_enc.shape
    D = cfg["d_model"]
    Dp = params["Dp"]
    T = cfg["seq_len"] + cfg["pred_len"]

    # Non-stationary normalization (tiny reductions: plain jnp glue)
    means = jnp.mean(x_enc, axis=1, keepdims=True)
    x0 = x_enc - means
    stdev = jnp.sqrt(jnp.var(x0, axis=1, keepdims=True) + 1e-5)
    x0 = x0 / stdev

    # --- DataEmbedding: circular Conv1d(k=3, no bias) + timeF Linear + pos ---
    xp = jnp.concatenate([x0[:, -1:, :], x0, x0[:, :1, :]], axis=1)   # (B, L+2, Cin)
    val = shifted_mt_gemm(xp, params["token_w"], None, [0, 1, 2], out_rows=L)
    tem = shifted_mt_gemm(x_mark_enc, params["temporal_w"], None, [0], out_rows=L)
    enc = val + tem + params["pos_emb"][None, :L, :]    # dropout: identity (eval)

    # --- predict_linear over the time axis ---
    xt = enc.transpose(0, 2, 1)                         # (B, Dp, L)
    yt = shifted_mt_gemm(xt, params["pred_w"], params["pred_b"], [0], out_rows=Dp)
    enc_out = yt.transpose(0, 2, 1)                     # (B, T, Dp)
    # the time-Linear bias leaks into the padded channel lanes: zero them so the
    # lane-padded pipeline stays numerically identical to the un-padded model.
    lane_mask = (jnp.arange(Dp) < D).astype(enc_out.dtype)
    enc_out = enc_out * lane_mask[None, None, :]

    # --- TimesBlocks with fused (combine + residual + shared LayerNorm) ---
    for blk in params["blocks"]:
        enc_out = times_block(enc_out, blk, cfg, params["ln_g"], params["ln_b"])

    # --- projection + de-normalization ---
    dec_out = shifted_mt_gemm(enc_out, params["proj_w"], params["proj_b"], [0],
                              out_rows=T)               # (B, T, c_out)
    dec_out = dec_out * stdev[:, 0, :][:, None, :] + means[:, 0, :][:, None, :]
    return dec_out[:, -cfg["pred_len"]:, :]


# ---------------------------------------------------------------------------
# Deterministic synthetic parameters (shapes match the module __init__)
# ---------------------------------------------------------------------------
def init_params(cfg, key):
    D, F = cfg["d_model"], cfg["d_ff"]
    Dp = _round_up(max(D, LANE), LANE)
    Fp = _round_up(max(F, LANE), LANE)
    L = cfg["seq_len"]
    T = cfg["seq_len"] + cfg["pred_len"]

    keys = jax.random.split(key, 256)
    it = iter(keys)

    def nrm(shape, scale=0.1):
        return scale * jax.random.normal(next(it), shape, dtype=jnp.float32)

    # sinusoidal positional embedding table (padded channel lanes stay zero)
    max_len = max(128, T)
    position = np.arange(max_len, dtype=np.float32)[:, None]
    div_term = np.exp(np.arange(0, D, 2, dtype=np.float32)
                      * -(math.log(10000.0) / D))
    pe = np.zeros((max_len, D), np.float32)
    pe[:, 0::2] = np.sin(position * div_term)
    pe[:, 1::2] = np.cos(position * div_term)

    params = {
        "Dp": Dp, "Fp": Fp,
        "token_w": _pad_axis(nrm((3, cfg["enc_in"], D)), 2, Dp),      # Conv1d taps
        "temporal_w": _pad_axis(nrm((1, cfg["mark_dim"], D)), 2, Dp),
        "pos_emb": _pad_axis(jnp.asarray(pe), 1, Dp),
        "pred_w": nrm((1, L, T)),
        "pred_b": nrm((T,), 0.01),
        "ln_g": _pad_axis(jnp.ones((1, D), jnp.float32), 1, Dp),
        "ln_b": jnp.zeros((1, Dp), jnp.float32),
        "proj_w": _pad_axis(nrm((1, D, cfg["c_out"])), 1, Dp),
        "proj_b": nrm((cfg["c_out"],), 0.01),
        "blocks": [],
    }

    ks_list = [2 * i + 1 for i in range(cfg["num_kernels"])]

    def make_inception(cin, cout, cin_p, cout_p):
        w_taps, biases = [], []
        for ks in ks_list:
            w = nrm((ks * ks, cin, cout))
            w_taps.append(_pad_axis(_pad_axis(w, 1, cin_p), 2, cout_p))
            biases.append(nrm((cout,), 0.01))
        return {
            "kernel_sizes": ks_list,
            "w": jnp.concatenate(w_taps, axis=0),          # (sum ks^2, cin_p, cout_p)
            # mean over kernel sizes folds the per-conv biases through the
            # 1/num_kernels scaling applied in the kernel epilogue.
            "b": _pad_axis(jnp.mean(jnp.stack(biases, 0), axis=0), 0, cout_p),
        }

    for _ in range(cfg["e_layers"]):
        params["blocks"].append({
            "conv1": make_inception(D, F, Dp, Fp),
            "conv2": make_inception(F, D, Fp, Dp),
        })
    return params


# ---------------------------------------------------------------------------
# Main
# ---------------------------------------------------------------------------
if __name__ == "__main__":
    cfg = dict(seq_len=16, label_len=8, pred_len=8,
               enc_in=4, c_out=4, d_model=32, d_ff=32,
               e_layers=1, top_k=2, num_kernels=2, mark_dim=4)

    key = jax.random.PRNGKey(0)
    pkey, k1, k2 = jax.random.split(key, 3)
    params = init_params(cfg, pkey)

    B = 2
    x_enc = jax.random.normal(k1, (B, cfg["seq_len"], cfg["enc_in"]), jnp.float32)
    x_mark_enc = jax.random.normal(k2, (B, cfg["seq_len"], cfg["mark_dim"]), jnp.float32)
    # x_dec / x_mark_dec are accepted but unused by forecast() (as in the module)
    x_dec = jnp.zeros((B, cfg["label_len"] + cfg["pred_len"], cfg["enc_in"]), jnp.float32)
    x_mark_dec = jnp.zeros((B, cfg["label_len"] + cfg["pred_len"], cfg["mark_dim"]), jnp.float32)

    out = timesnet_forward(params, cfg, x_enc, x_mark_enc, x_dec, x_mark_dec)
    out = jax.block_until_ready(out)
    assert out.shape == (B, cfg["pred_len"], cfg["c_out"]), out.shape
    assert bool(jnp.all(jnp.isfinite(out)))
    print("KERNEL_OK")
</pallas_src>

<mosaic_0001>
module attributes {stable_mosaic.version = 11 : i64} {
  func.func @_shifted_mt_gemm_kernel(%arg0: i32, %arg1: i32, %arg2: i32, %arg3: i32, %arg4: memref<3xi32, #tpu.memory_space<smem>>, %arg5: memref<1x18x128xf32, #tpu.memory_space<vmem>>, %arg6: memref<1x128x128xbf16, #tpu.memory_space<vmem>>, %arg7: memref<1x128xf32, #tpu.memory_space<vmem>>, %arg8: memref<1x16x128xf32, #tpu.memory_space<vmem>>) attributes {dimension_semantics = [#tpu.dimension_semantics<parallel>, #tpu.dimension_semantics<parallel>, #tpu.dimension_semantics<parallel>, #tpu.dimension_semantics<arbitrary>], iteration_bounds = array<i64: 2, 1, 1, 3>, scalar_prefetch = 1 : i64, scratch_operands = 0 : i64, tpu.core_type = #tpu.core_type<tc>, window_params = [{transform_indices = @transform_0, window_bounds = array<i64: 1, 18, 128>}, {transform_indices = @transform_1, window_bounds = array<i64: 1, 128, 128>}, {transform_indices = @transform_2, window_bounds = array<i64: 1, 128>}, {transform_indices = @transform_3, window_bounds = array<i64: 1, 16, 128>}]} {
    %c0_i32 = arith.constant 0 : i32
    %0 = arith.cmpi eq, %arg3, %c0_i32 : i32
    %1 = arith.extui %0 : i1 to i32
    %c0_i32_0 = arith.constant 0 : i32
    %2 = arith.cmpi ne, %1, %c0_i32_0 : i32
    scf.if %2 {
      %cst_12 = arith.constant 0.000000e+00 : f32
      %23 = vector.broadcast %cst_12 : f32 to vector<16x128xf32>
      %c0_13 = arith.constant 0 : index
      %c0_14 = arith.constant 0 : index
      %c0_15 = arith.constant 0 : index
      %24 = vector.load %arg8[%c0_13, %c0_14, %c0_15] : memref<1x16x128xf32, #tpu.memory_space<vmem>>, vector<1x16x128xf32>
      %25 = vector.shape_cast %24 : vector<1x16x128xf32> to vector<16x128xf32>
      %26 = vector.shape_cast %23 : vector<16x128xf32> to vector<1x16x128xf32>
      tpu.vector_store %arg8[%c0_13, %c0_14, %c0_15], %26 {strides = array<i32>} : memref<1x16x128xf32, #tpu.memory_space<vmem>>, vector<1x16x128xf32>,
    } else {
    }
    %c16_i32 = arith.constant 16 : i32
    %3 = arith.muli %arg1, %c16_i32 : i32
    %4 = arith.index_cast %arg3 : i32 to index
    %5 = memref.load %arg4[%4] : memref<3xi32, #tpu.memory_space<smem>>
    %6 = arith.addi %3, %5 : i32
    %c0 = arith.constant 0 : index
    %7 = arith.index_cast %6 : i32 to index
    %c0_1 = arith.constant 0 : index
    %8 = vector.load %arg5[%c0, %7, %c0_1] : memref<1x18x128xf32, #tpu.memory_space<vmem>>, vector<1x16x128xf32>
    %9 = vector.shape_cast %8 : vector<1x16x128xf32> to vector<16x128xf32>
    %10 = arith.truncf %9 : vector<16x128xf32> to vector<16x128xbf16>
    %c0_2 = arith.constant 0 : index
    %c0_3 = arith.constant 0 : index
    %c0_4 = arith.constant 0 : index
    %11 = vector.load %arg8[%c0_2, %c0_3, %c0_4] : memref<1x16x128xf32, #tpu.memory_space<vmem>>, vector<1x16x128xf32>
    %12 = vector.shape_cast %11 : vector<1x16x128xf32> to vector<16x128xf32>
    %c0_5 = arith.constant 0 : index
    %c0_6 = arith.constant 0 : index
    %c0_7 = arith.constant 0 : index
    %13 = vector.load %arg6[%c0_5, %c0_6, %c0_7] : memref<1x128x128xbf16, #tpu.memory_space<vmem>>, vector<1x128x128xbf16>
    %14 = vector.shape_cast %13 : vector<1x128x128xbf16> to vector<128x128xbf16>
    %cst = arith.constant dense<0.000000e+00> : vector<16x128xf32>
    %15 = tpu.matmul %10, %14, %cst {dimension_numbers = #tpu.dot_dimension_numbers<[1], [0], [0], [1], [0, 0, 1, 1], [], []>} : vector<16x128xbf16>, vector<128x128xbf16>, vector<16x128xf32> -> vector<16x128xf32>
    %16 = arith.addf %12, %15 : vector<16x128xf32>
    %c0_8 = arith.constant 0 : index
    %c0_9 = arith.constant 0 : index
    %c0_10 = arith.constant 0 : index
    %17 = vector.load %arg8[%c0_8, %c0_9, %c0_10] : memref<1x16x128xf32, #tpu.memory_space<vmem>>, vector<1x16x128xf32>
    %18 = vector.shape_cast %17 : vector<1x16x128xf32> to vector<16x128xf32>
    %19 = vector.shape_cast %16 : vector<16x128xf32> to vector<1x16x128xf32>
    tpu.vector_store %arg8[%c0_8, %c0_9, %c0_10], %19 {strides = array<i32>} : memref<1x16x128xf32, #tpu.memory_space<vmem>>, vector<1x16x128xf32>,
    %c2_i32 = arith.constant 2 : i32
    %20 = arith.cmpi eq, %arg3, %c2_i32 : i32
    %21 = arith.extui %20 : i1 to i32
    %c0_i32_11 = arith.constant 0 : i32
    %22 = arith.cmpi ne, %21, %c0_i32_11 : i32
    scf.if %22 {
      %c0_12 = arith.constant 0 : index
      %c0_13 = arith.constant 0 : index
      %c0_14 = arith.constant 0 : index
      %23 = vector.load %arg8[%c0_12, %c0_13, %c0_14] : memref<1x16x128xf32, #tpu.memory_space<vmem>>, vector<1x16x128xf32>
      %24 = vector.shape_cast %23 : vector<1x16x128xf32> to vector<16x128xf32>
      %cst_15 = arith.constant 1.000000e+00 : f32
      %25 = vector.broadcast %cst_15 : f32 to vector<16x128xf32>
      %26 = arith.mulf %24, %25 : vector<16x128xf32>
      %c0_16 = arith.constant 0 : index
      %c0_17 = arith.constant 0 : index
      %27 = vector.load %arg7[%c0_16, %c0_17] : memref<1x128xf32, #tpu.memory_space<vmem>>, vector<1x128xf32>
      %28 = vector.broadcast %27 : vector<1x128xf32> to vector<16x128xf32>
      %29 = arith.addf %26, %28 : vector<16x128xf32>
      %c0_18 = arith.constant 0 : index
      %c0_19 = arith.constant 0 : index
      %c0_20 = arith.constant 0 : index
      %30 = vector.load %arg8[%c0_18, %c0_19, %c0_20] : memref<1x16x128xf32, #tpu.memory_space<vmem>>, vector<1x16x128xf32>
      %31 = vector.shape_cast %30 : vector<1x16x128xf32> to vector<16x128xf32>
      %32 = vector.shape_cast %29 : vector<16x128xf32> to vector<1x16x128xf32>
      tpu.vector_store %arg8[%c0_18, %c0_19, %c0_20], %32 {strides = array<i32>} : memref<1x16x128xf32, #tpu.memory_space<vmem>>, vector<1x16x128xf32>,
    } else {
    }
    return
  }
  func.func @transform_0(%arg0: i32, %arg1: i32, %arg2: i32, %arg3: i32, %arg4: memref<3xi32, #tpu.memory_space<smem>>) -> (i32, i32, i32) {
    %c0_i32 = arith.constant 0 : i32
    %c0_i32_0 = arith.constant 0 : i32
    %c0_i32_1 = arith.constant 0 : i32
    return %arg0, %c0_i32, %c0_i32_0 : i32, i32, i32
  }
  func.func @transform_1(%arg0: i32, %arg1: i32, %arg2: i32, %arg3: i32, %arg4: memref<3xi32, #tpu.memory_space<smem>>) -> (i32, i32, i32) {
    %c0_i32 = arith.constant 0 : i32
    %c0_i32_0 = arith.constant 0 : i32
    return %arg3, %c0_i32, %arg2 : i32, i32, i32
  }
  func.func @transform_2(%arg0: i32, %arg1: i32, %arg2: i32, %arg3: i32, %arg4: memref<3xi32, #tpu.memory_space<smem>>) -> (i32, i32) {
    %c0_i32 = arith.constant 0 : i32
    %c0_i32_0 = arith.constant 0 : i32
    return %c0_i32, %arg2 : i32, i32
  }
  func.func @transform_3(%arg0: i32, %arg1: i32, %arg2: i32, %arg3: i32, %arg4: memref<3xi32, #tpu.memory_space<smem>>) -> (i32, i32, i32) {
    %c0_i32 = arith.constant 0 : i32
    return %arg0, %arg1, %arg2 : i32, i32, i32
  }
}

</mosaic_0001>

<llo_original>
// kernel: tpu_custom_call.1
$region0: #{tpu_custom_call.1}
  #allocation0 [shape = 'u32[]', space=smem, size = 0x4, offset = 0x4, fixed_abs, tag = 'smem constant byte address 0x4 - core index']
  #allocation1 [shape = 'u32[72,128]{1,0:T(1,128)}', space=vmem, size = 0x9000, scoped, tag = 'internal scratch']
  #allocation2 [shape = 's32[1]{0}', space=sflag, size = 0x4, scoped, tag = 'scoped memory for tpu_custom_call.1']
  #allocation3 [shape = 'u8[512]{0}', space=smem, size = 0x200, scoped, tag = 'prefetched SMEM operand 0']
  %s0 = inlined_call_operand.vmem [shape: s32[3], index: 0, kind: input, shape index: {}]
  %s1 = inlined_call_operand.vmem [shape: f32[2,18,128], index: 1, kind: input, shape index: {}]
  %s2 = inlined_call_operand.hbm [shape: bf16[3,128,128], index: 2, kind: input, shape index: {}]
  %s3 = inlined_call_operand.vmem [shape: f32[1,128], index: 3, kind: input, shape index: {}]
  %s4 = inlined_call_operand.hbm [shape: f32[2,16,128], index: 4, kind: output, shape index: {}]
  %s5 = sld [smem:[#allocation0]]
  $region57: #{tpu_custom_call.1} parent=0
    _
  %s7 = ssub.s32 1, %s5
  %s8 = scalar_select 0, %s7, %s5
  %s10 = sshll.u32 %s0, 4
  %s11 = int_to_ptr.vmem [resolvable:$true] %s10
  %13 = dma.vmem_to_smem %s11, 16, [#allocation3], [#allocation2]
  %15 = dma.done [#allocation2], 16
  %16 = sfence
  $region1: #{tpu_custom_call.1} parent=0
    #allocation4 [shape = 'u8[65536]{0}', space=vmem, size = 0x10000, scoped, tag = 'input window, operand 2']
    #allocation5 [shape = 's32[2]{0}', space=sflag, size = 0x8, scoped, tag = 'scoped memory for tpu_custom_call.1']
    #allocation6 [shape = 's32[2]{0}', space=sflag, size = 0x8, scoped, tag = 'scoped memory for tpu_custom_call.1']
    #allocation7 [shape = 'u8[16384]{0}', space=vmem, size = 0x4000, scoped, tag = 'output window, operand 0']
    %17 = vsyncpa [#allocation5], 0
    %s18 = scalar_lea.sflag [#allocation5], 1
    %19 = vsyncpa %s18, 0
    %20 = vsyncpa [#allocation6], 0
    %s21 = scalar_lea.sflag [#allocation6], 1
    %22 = vsyncpa %s21, 0
    loop: start=0, step=1, limit=8
    $region2: #{tpu_custom_call.1} parent=1 // loop_pre_header
      _
    $region3: #{tpu_custom_call.1} parent=1 // loop_header
      %s24 = sphi 0, %s28
      %p25 = scmp.ge.s32.totalorder %s24, 8
      %s31 = sphi 0, %s57
      %s32 = sphi 0, %s53
      %s33 = sphi 0, %s49
      %s34 = sphi 0, %s45
      %s35 = sphi 0, %s31
      %s36 = sphi 0, %s32
      %s37 = sphi 0, %s33
      %s38 = sphi 0, %s34
      %s39 = sphi 0, %s35
      %s40 = sphi 0, %s36
      %s41 = sphi 0, %s37
      %s42 = sphi 0, %s38
      %s60 = sphi 0, %s62
      %s63 = sphi 0, %s60
      %s64 = sphi 0, %s63
      %s80 = sphi 0, %s64
      %s88 = sphi 0, %s90
      %s91 = sphi 0, %s88
      %s92 = sphi 0, %s91
      %s108 = sphi 0, %s92
      %s114 = sphi 0, %s116
      %s117 = sphi 0, %s114
      %s118 = sphi 0, %s117
      %s134 = sphi 0, %s118
      %s144 = sphi 0, %s146
      %s147 = sphi 0, %s144
      %s148 = sphi 0, %s147
      %s164 = sphi 0, %s148
    $region4: #{tpu_custom_call.1} parent=1 // loop_header_branch
      %27 = sbr.rel (%p25) target = $region8
    $region5: #{tpu_custom_call.1} parent=1 // loop_body
      %s29 = ssub.s32 %s24, 1
      %s30 = ssub.s32 %s24, 2
      %s43 = sadd.s32 1, %s34
      %p44 = scmp.ge.s32.totalorder %s43, 3
      %s45 = scalar_select %p44, 0, %s43
      %s46 = sadd.s32 1, %s33
      %s47 = scalar_select %p44, %s46, %s33
      %p48 = scmp.ge.s32.totalorder %s47, 1
      %s49 = scalar_select %p48, 0, %s47
      %s50 = sadd.s32 1, %s32
      %s51 = scalar_select %p48, %s50, %s32
      %p52 = scmp.ge.s32.totalorder %s51, 1
      %s53 = scalar_select %p52, 0, %s51
      %s54 = sadd.s32 1, %s31
      %s55 = scalar_select %p52, %s54, %s31
      %p56 = scmp.ge.s32.totalorder %s55, 2
      %s57 = scalar_select %p56, 0, %s55
      %s58 = ssub.s32 %s31, %s57
      %p59 = scmp.eq.s32.totalorder %s58, 0
      %s61 = sadd.s32 %s60, 1
      %s62 = scalar_select %p59, %s60, %s61
      %p65 = pneg %p59
      %p66 = scmp.eq.s32.totalorder %s24, 5
      %p67 = por %p65, %p66
      %p68 = scmp.ne.s32.totalorder %s60, %s63
      %p69 = scmp.eq.s32.totalorder %s24, 0
      %p70 = por %p68, %p69
      %p71 = scmp.ne.s32.totalorder %s60, %s63
      %p72 = scmp.eq.s32.totalorder %s29, 5
      %p73 = por %p71, %p72
      %p74 = scmp.ne.s32.totalorder %s63, %s64
      %p75 = scmp.eq.s32.totalorder %s29, 0
      %p76 = por %p74, %p75
      %p77 = scmp.ne.s32.totalorder %s63, %s64
      %p78 = scmp.eq.s32.totalorder %s30, 5
      %p79 = por %p77, %p78
      %p81 = scmp.ne.s32.totalorder %s64, %s80
      %p82 = scmp.eq.s32.totalorder %s30, 0
      %p83 = por %p81, %p82
      %s84 = ssub.s32 %s34, %s45
      %s85 = ssub.s32 %s33, %s49
      %s86 = sor.u32 %s84, %s85
      %p87 = scmp.eq.s32.totalorder %s86, 0
      %s89 = sadd.s32 %s88, 1
      %s90 = scalar_select %p87, %s88, %s89
      %p93 = pneg %p87
      %p94 = scmp.eq.s32.totalorder %s24, 5
      %p95 = por %p93, %p94
      %p96 = scmp.ne.s32.totalorder %s88, %s91
      %p97 = scmp.eq.s32.totalorder %s24, 0
      %p98 = por %p96, %p97
      %p99 = scmp.ne.s32.totalorder %s88, %s91
      %p100 = scmp.eq.s32.totalorder %s29, 5
      %p101 = por %p99, %p100
      %p102 = scmp.ne.s32.totalorder %s91, %s92
      %p103 = scmp.eq.s32.totalorder %s29, 0
      %p104 = por %p102, %p103
      %p105 = scmp.ne.s32.totalorder %s91, %s92
      %p106 = scmp.eq.s32.totalorder %s30, 5
      %p107 = por %p105, %p106
      %p109 = scmp.ne.s32.totalorder %s92, %s108
      %p110 = scmp.eq.s32.totalorder %s30, 0
      %p111 = por %p109, %p110
      %s112 = ssub.s32 %s33, %s49
      %p113 = scmp.eq.s32.totalorder %s112, 0
      %s115 = sadd.s32 %s114, 1
      %s116 = scalar_select %p113, %s114, %s115
      %p119 = pneg %p113
      %p120 = scmp.eq.s32.totalorder %s24, 5
      %p121 = por %p119, %p120
      %p122 = scmp.ne.s32.totalorder %s114, %s117
      %p123 = scmp.eq.s32.totalorder %s24, 0
      %p124 = por %p122, %p123
      %p125 = scmp.ne.s32.totalorder %s114, %s117
      %p126 = scmp.eq.s32.totalorder %s29, 5
      %p127 = por %p125, %p126
      %p128 = scmp.ne.s32.totalorder %s117, %s118
      %p129 = scmp.eq.s32.totalorder %s29, 0
      %p130 = por %p128, %p129
      %p131 = scmp.ne.s32.totalorder %s117, %s118
      %p132 = scmp.eq.s32.totalorder %s30, 5
      %p133 = por %p131, %p132
      %p135 = scmp.ne.s32.totalorder %s118, %s134
      %p136 = scmp.eq.s32.totalorder %s30, 0
      %p137 = por %p135, %p136
      %s138 = ssub.s32 %s31, %s57
      %s139 = ssub.s32 %s32, %s53
      %s140 = sor.u32 %s138, %s139
      %s141 = ssub.s32 %s33, %s49
      %s142 = sor.u32 %s140, %s141
      %p143 = scmp.eq.s32.totalorder %s142, 0
      %s145 = sadd.s32 %s144, 1
      %s146 = scalar_select %p143, %s144, %s145
      %p149 = pneg %p143
      %p150 = scmp.eq.s32.totalorder %s24, 5
      %p151 = por %p149, %p150
      %p152 = scmp.ne.s32.totalorder %s144, %s147
      %p153 = scmp.eq.s32.totalorder %s24, 0
      %p154 = por %p152, %p153
      %p155 = scmp.ne.s32.totalorder %s144, %s147
      %p156 = scmp.eq.s32.totalorder %s29, 5
      %p157 = por %p155, %p156
      %p158 = scmp.ne.s32.totalorder %s147, %s148
      %p159 = scmp.eq.s32.totalorder %s29, 0
      %p160 = por %p158, %p159
      %p161 = scmp.ne.s32.totalorder %s147, %s148
      %p162 = scmp.eq.s32.totalorder %s30, 5
      %p163 = por %p161, %p162
      %p165 = scmp.ne.s32.totalorder %s148, %s164
      %p166 = scmp.eq.s32.totalorder %s30, 0
      %p167 = por %p165, %p166
      %p168 = scmp.le.s32.totalorder 1, %s24
      %p169 = scmp.lt.s32.totalorder %s24, 7
      %p170 = pnand %p168, %p169
      %p171 = pneg %p170
      // Predicated region
      $region9: #{tpu_custom_call.1} parent=5 // pred_check
        _
      $region10: #{tpu_custom_call.1} parent=5 // pred_check_branch
        %173 = sbr.rel (%p170) target = $region12
      $region11: #{tpu_custom_call.1} parent=5 // pred_region
        %s174 = ssub.s32 %s24, 1
        // Predicated region
        $region13: #{tpu_custom_call.1} parent=11 // pred_check
          %p175 = pneg %p130
        $region14: #{tpu_custom_call.1} parent=11 // pred_check_branch
          %177 = sbr.rel (%p175) target = $region16
        $region15: #{tpu_custom_call.1} parent=11 // pred_region
          %p178 = scmp.lt.s32.totalorder %s37, 0
          %s179 = scalar_select %p178, %s37, 0
          %s180 = scalar_lea.vmem %s3, %s179
        $region16: #{tpu_custom_call.1} parent=11 // pred_fallthru
          _
      $region12: #{tpu_custom_call.1} parent=5 // pred_fallthru
        _
      %p181 = scmp.lt.s32.totalorder %s24, 6
      // Predicated region
      $region17: #{tpu_custom_call.1} parent=5 // pred_check
        %p182 = pneg %p181
      $region18: #{tpu_custom_call.1} parent=5 // pred_check_branch
        %184 = sbr.rel (%p182) target = $region20
      $region19: #{tpu_custom_call.1} parent=5 // pred_region
        // Predicated region
        $region21: #{tpu_custom_call.1} parent=19 // pred_check
          %p185 = pneg %p70
        $region22: #{tpu_custom_call.1} parent=19 // pred_check_branch
          %187 = sbr.rel (%p185) target = $region24
        $region23: #{tpu_custom_call.1} parent=19 // pred_region
          %p188 = scmp.lt.s32.totalorder %s31, 1
          %s189 = scalar_select %p188, %s31, 1
          %s190 = smul.addr %s189, 3
          %s191 = smul.addr %s190, 8
          %s192 = scalar_lea.vmem %s1, %s191
        $region24: #{tpu_custom_call.1} parent=19 // pred_fallthru
          _
        // Predicated region
        $region25: #{tpu_custom_call.1} parent=19 // pred_check
          %p193 = pneg %p98
        $region26: #{tpu_custom_call.1} parent=19 // pred_check_branch
          %195 = sbr.rel (%p193) target = $region28
        $region27: #{tpu_custom_call.1} parent=19 // pred_region
          %s196 = sand.u32 %s88, 1
          %s197 = scalar_lea.sflag [#allocation5], %s196
          %s198 = sand.u32 %s88, 1
          %s199 = smul.addr %s198, 64
          %s200 = scalar_lea.vmem [#allocation4], %s199
          %202 = vsyncadd %s197, 0
          %s203 = smul.addr %s34, 16
          %s204 = sadd.s32 %s33, %s203
          %s205 = smul.addr %s204, 4
          %s206 = scalar_lea.hbm %s2, %s205
          %s207 = sshll.u32 %s206, 4
          %s208 = int_to_ptr.hbm [resolvable:$true] %s207
          %s209 = sshll.u32 %s200, 4
          %s210 = int_to_ptr.vmem [resolvable:$true] %s209
          %215 = dma.hbm_to_vmem [thread:$0]  %s208, 1024, %s210, %s197, 64, 64, 4
        $region28: #{tpu_custom_call.1} parent=19 // pred_fallthru
          _
      $region20: #{tpu_custom_call.1} parent=5 // pred_fallthru
        _
      %p216 = scmp.le.s32.totalorder 1, %s24
      %p217 = scmp.lt.s32.totalorder %s24, 7
      %p218 = pnand %p216, %p217
      %p219 = pneg %p218
      // Predicated region
      $region29: #{tpu_custom_call.1} parent=5 // pred_check
        _
      $region30: #{tpu_custom_call.1} parent=5 // pred_check_branch
        %221 = sbr.rel (%p218) target = $region32
      $region31: #{tpu_custom_call.1} parent=5 // pred_region
        %s222 = ssub.s32 %s24, 1
        %s223 = sand.u32 %s91, 1
        %s224 = scalar_lea.sflag [#allocation5], %s223
        %s225 = sand.u32 %s91, 1
        %s226 = smul.addr %s225, 64
        %s227 = scalar_lea.vmem [#allocation4], %s226
        // Predicated region
        $region33: #{tpu_custom_call.1} parent=31 // pred_check
          %p228 = pneg %p104
        $region34: #{tpu_custom_call.1} parent=31 // pred_check_branch
          %230 = sbr.rel (%p228) target = $region36
        $region35: #{tpu_custom_call.1} parent=31 // pred_region
          %232 = dma.done %s224, 1024
        $region36: #{tpu_custom_call.1} parent=31 // pred_fallthru
          _
        %p233 = scmp.lt.s32.totalorder %s35, 1
        %s234 = scalar_select %p233, %s35, 1
        %s235 = smul.addr %s234, 3
        %s236 = smul.addr %s235, 8
        %s237 = scalar_lea.vmem %s1, %s236
        %p238 = pneg %p76
        %p239 = pneg %p73
        %s240 = sand.u32 %s91, 1
        %s241 = scalar_lea.sflag [#allocation5], %s240
        %s242 = sand.u32 %s91, 1
        %s243 = smul.addr %s242, 64
        %s244 = scalar_lea.vmem [#allocation4], %s243
        %p245 = pneg %p104
        %p246 = pneg %p101
        %p247 = scmp.lt.s32.totalorder %s37, 0
        %s248 = scalar_select %p247, %s37, 0
        %s249 = scalar_lea.vmem %s3, %s248
        %p250 = pneg %p130
        %p251 = pneg %p127
        %p252 = pneg %p160
        %p253 = pneg %p157
        %s254 = sand.u32 %s147, 1
        %s255 = scalar_lea.sflag [#allocation6], %s254
        %s256 = sand.u32 %s147, 1
        %s257 = smul.addr %s256, 16
        %s258 = scalar_lea.vmem [#allocation7], %s257
        %p259 = scmp.lt.s32.totalorder %s35, 1
        %s260 = scalar_select %p259, %s35, 1
        %s261 = smul.addr %s260, 3
        %s262 = smul.addr %s261, 8
        %s263 = scalar_lea.vmem %s1, %s262
        %p264 = scmp.lt.s32.totalorder %s37, 0
        %s265 = scalar_select %p264, %s37, 0
        %s266 = scalar_lea.vmem %s3, %s265
        %s267 = smul.u32 2, %s36
        %p268 = scmp.eq.s32.totalorder %s38, 0
        // Predicated region
        $region37: #{tpu_custom_call.1} parent=31 // pred_check
          %p269 = pneg %p268
        $region38: #{tpu_custom_call.1} parent=31 // pred_check_branch
          %271 = sbr.rel (%p269) target = $region40
        $region39: #{tpu_custom_call.1} parent=31 // pred_region
          %272 = vst [vmem:[%s258] sm:$0xff] 0.0
          %273 = vst [vmem:[%s258 + $0x8] sm:$0xff] 0.0
        $region40: #{tpu_custom_call.1} parent=31 // pred_fallthru
          _
        %s274 = smul.u32 %s36, 16
        %s275 = sld [smem:[#allocation3 + %s38]]
        %s276 = sadd.s32 %s274, %s275
        %s277 = scalar_lea.vmem %s263, %s276
        %v278 = vld [vmem:[%s277] sm:$0xff]
        %v279 = vld [vmem:[%s277 + $0x8] sm:$0xff]
        %v280 = vpack.c.bf16 %v279, %v278
        %v281 = vld [vmem:[%s258] sm:$0xff]
        %v282 = vld [vmem:[%s258 + $0x8] sm:$0xff]
        %v283 = vld [vmem:[%s227] sm:$0xf]
        %v284 = vld [vmem:[%s227 + $0x4] sm:$0xf]
        %v285 = vld [vmem:[%s227 + $0x8] sm:$0xf]
        %v286 = vld [vmem:[%s227 + $0xc] sm:$0xf]
        %v287 = vld [vmem:[%s227 + $0x10] sm:$0xf]
        %v288 = vld [vmem:[%s227 + $0x14] sm:$0xf]
        %v289 = vld [vmem:[%s227 + $0x18] sm:$0xf]
        %v290 = vld [vmem:[%s227 + $0x1c] sm:$0xf]
        %v291 = vld [vmem:[%s227 + $0x20] sm:$0xf]
        %v292 = vld [vmem:[%s227 + $0x24] sm:$0xf]
        %v293 = vld [vmem:[%s227 + $0x28] sm:$0xf]
        %v294 = vld [vmem:[%s227 + $0x2c] sm:$0xf]
        %v295 = vld [vmem:[%s227 + $0x30] sm:$0xf]
        %v296 = vld [vmem:[%s227 + $0x34] sm:$0xf]
        %v297 = vld [vmem:[%s227 + $0x38] sm:$0xf]
        %v298 = vld [vmem:[%s227 + $0x3c] sm:$0xf]
        %v315 = vunpack.c.l.b16 %v283
        %v316 = vunpack.c.l.b16 %v284
        %v317 = vunpack.c.l.b16 %v285
        %v318 = vunpack.c.l.b16 %v286
        %v319 = vunpack.c.l.b16 %v287
        %v320 = vunpack.c.l.b16 %v288
        %v321 = vunpack.c.l.b16 %v289
        %v322 = vunpack.c.l.b16 %v290
        %v323 = vunpack.c.l.b16 %v291
        %v324 = vunpack.c.l.b16 %v292
        %v325 = vunpack.c.l.b16 %v293
        %v326 = vunpack.c.l.b16 %v294
        %v327 = vunpack.c.l.b16 %v295
        %v328 = vunpack.c.l.b16 %v296
        %v329 = vunpack.c.l.b16 %v297
        %v330 = vunpack.c.l.b16 %v298
        %v331 = vpack.c.b16 %v316, %v315
        %v332 = vpack.c.b16 %v318, %v317
        %v333 = vpack.c.b16 %v320, %v319
        %v334 = vpack.c.b16 %v322, %v321
        %v335 = vpack.c.b16 %v324, %v323
        %v336 = vpack.c.b16 %v326, %v325
        %v337 = vpack.c.b16 %v328, %v327
        %v338 = vpack.c.b16 %v330, %v329
        %347 = vmatpush.bf16.msra.mxu0 %v338
        %348 = vmatpush.bf16.msra.mxu0 %v337
        %349 = vmatpush.bf16.msra.mxu0 %v336
        %350 = vmatpush.bf16.msra.mxu0 %v335
        %351 = vmatpush.bf16.msra.mxu0 %v334
        %352 = vmatpush.bf16.msra.mxu0 %v333
        %353 = vmatpush.bf16.msra.mxu0 %v332
        %354 = vmatpush.bf16.msra.mxu0 %v331
        %355 = vmatmul.bf16.gmra.mxu0 %v280
        %v356 = vpop.f32.mrf.mxu0
        %v357 = vadd.f32 0.0, %v356
        %v358 = vpop.f32.mrf.mxu0
        %v359 = vadd.f32 0.0, %v358
        %360 = vdwg.mxu0
        %v361 = vadd.f32 %v281, %v357
        %v362 = vadd.f32 %v282, %v359
        %363 = vst [vmem:[%s258] sm:$0xff] %v361
        %364 = vst [vmem:[%s258 + $0x8] sm:$0xff] %v362
        %p365 = scmp.eq.s32.totalorder %s38, 2
        // Predicated region
        $region41: #{tpu_custom_call.1} parent=31 // pred_check
          %p366 = pneg %p365
        $region42: #{tpu_custom_call.1} parent=31 // pred_check_branch
          %368 = sbr.rel (%p366) target = $region44
        $region43: #{tpu_custom_call.1} parent=31 // pred_region
          %v369 = vld [vmem:[%s258] sm:$0xff]
          %v370 = vld [vmem:[%s258 + $0x8] sm:$0xff]
          %v371 = vld [vmem:[%s266] sm:$0x1]
          %v373 = vperm.slane %v371, 0
          %v375 = vadd.f32 %v369, %v373
          %v376 = vadd.f32 %v370, %v373
          %377 = vst [vmem:[%s258] sm:$0xff] %v375
          %378 = vst [vmem:[%s258 + $0x8] sm:$0xff] %v376
        $region44: #{tpu_custom_call.1} parent=31 // pred_fallthru
          _
        %s379 = sand.u32 %s147, 1
        %s380 = scalar_lea.sflag [#allocation6], %s379
        %s381 = sand.u32 %s147, 1
        %s382 = smul.addr %s381, 16
        %s383 = scalar_lea.vmem [#allocation7], %s382
        // Predicated region
        $region45: #{tpu_custom_call.1} parent=31 // pred_check
          %p384 = pneg %p157
        $region46: #{tpu_custom_call.1} parent=31 // pred_check_branch
          %386 = sbr.rel (%p384) target = $region48
        $region47: #{tpu_custom_call.1} parent=31 // pred_region
          %s387 = smul.u32 2, %s36
          %389 = vsyncadd %s380, 0
          %s390 = sadd.s32 %s37, %s387
          %s391 = smul.addr %s35, 2
          %s392 = sadd.s32 %s390, %s391
          %s393 = smul.addr %s392, 8
          %s394 = scalar_lea.hbm %s4, %s393
          %s395 = sshll.u32 %s383, 4
          %s396 = int_to_ptr.vmem [resolvable:$true] %s395
          %s397 = sshll.u32 %s394, 4
          %s398 = int_to_ptr.hbm [resolvable:$true] %s397
          %403 = dma.vmem_to_hbm [thread:$0]  %s396, 256, %s398, %s380, 128, 128, 8
        $region48: #{tpu_custom_call.1} parent=31 // pred_fallthru
          _
      $region32: #{tpu_custom_call.1} parent=5 // pred_fallthru
        _
      %p404 = scmp.le.s32.totalorder 2, %s24
      // Predicated region
      $region49: #{tpu_custom_call.1} parent=5 // pred_check
        %p405 = pneg %p404
      $region50: #{tpu_custom_call.1} parent=5 // pred_check_branch
        %407 = sbr.rel (%p405) target = $region52
      $region51: #{tpu_custom_call.1} parent=5 // pred_region
        %s408 = ssub.s32 %s24, 2
        // Predicated region
        $region53: #{tpu_custom_call.1} parent=51 // pred_check
          %p409 = pneg %p163
        $region54: #{tpu_custom_call.1} parent=51 // pred_check_branch
          %411 = sbr.rel (%p409) target = $region56
        $region55: #{tpu_custom_call.1} parent=51 // pred_region
          %s412 = sand.u32 %s148, 1
          %s413 = scalar_lea.sflag [#allocation6], %s412
          %s414 = sand.u32 %s148, 1
          %s415 = smul.addr %s414, 16
          %s416 = scalar_lea.vmem [#allocation7], %s415
          %418 = dma.done %s413, 256
        $region56: #{tpu_custom_call.1} parent=51 // pred_fallthru
          _
      $region52: #{tpu_custom_call.1} parent=5 // pred_fallthru
        _
    $region6: #{tpu_custom_call.1} parent=1 // loop_footer
      %s28 = sadd.s32 1, %s24
    $region7: #{tpu_custom_call.1} parent=1 // loop_footer_branch
      %23 = sbr.rel target = $region3
    $region8: #{tpu_custom_call.1} parent=1 // loop_exit
      _
    %419 = vsyncpa [#allocation5], 1
    %s420 = scalar_lea.sflag [#allocation5], 1
    %421 = vsyncpa %s420, 1
    %422 = vsyncpa [#allocation6], 1
    %s423 = scalar_lea.sflag [#allocation6], 1
    %424 = vsyncpa %s423, 1

</llo_original>
